<compile_context>
chip_gen: v7x
topology: tpu7x:2x2x1
jax: 0.10.0
libtpu: 0.0.40
codegen_flags: <defaults>
</compile_context>

<pallas_src>
import functools

import jax
import jax.numpy as jnp
from jax import lax
from jax.experimental import pallas as pl
from jax.experimental.pallas import tpu as pltpu


def _loss_kernel(len_ref, out_ref, lab_ref, res_ref, *, num_classes):
    """One grid step = one block of B samples flattened to (B, LCp).

    Writes per-sample loss  -sum(label * log(output + 1e-7)) / length  into res_ref (B, 1).
    """
    delta = jnp.float32(1e-07)

    x = out_ref[...].astype(jnp.float32)          # (B, LCp)
    y = lab_ref[...].astype(jnp.float32)          # (B, LCp)
    lengths = len_ref[...]                        # (B, 1) int32 (0 for padded rows)

    B, LC = x.shape
    col = lax.broadcasted_iota(jnp.int32, (B, LC), 1)
    # Flattened (L, C) -> L*C: sequence position l occupies C contiguous columns,
    # so the PyTorch "0:length" row slice becomes the flat mask  col < length*C.
    # (Lane-padding columns sit at col >= L*C >= length*C, so they are masked too.)
    mask = col < lengths * num_classes

    # Folded selects: one where per stream, delta folded into the log clamp.
    # Masked/garbage columns: y -> 0, log argument -> 1 (log = 0), so they add 0
    # and NaN/Inf in out-of-range data cannot propagate.
    ym = jnp.where(mask, y, jnp.float32(0.0))
    xs = jnp.where(mask, x + delta, jnp.float32(1.0))
    s = jnp.sum(ym * jnp.log(xs), axis=1, keepdims=True)   # (B, 1)

    lf = lengths.astype(jnp.float32)
    inv_len = jnp.where(lf > 0, 1.0 / jnp.maximum(lf, jnp.float32(1.0)),
                        jnp.float32(0.0))
    res_ref[...] = -(s * inv_len)


def _round_up(x, m):
    return -(-x // m) * m


def _choose_block(num_sample, lc_pad):
    """Pick the per-step sample-block size B_blk (multiple of 8)."""
    # Size on the f32-equivalent working set (in-kernel temporaries are f32 no matter
    # the input dtype) and cap each streamed input block at ~1 MiB: the HBM roofline
    # is already flat there and it keeps 2 inputs x 2 pipeline buffers + f32 temps
    # far below the 32 MiB scoped / 64 MiB physical VMEM on v7x.
    row_bytes_f32 = lc_pad * 4
    cap = max(8, ((1 << 20) // row_bytes_f32 // 8) * 8)

    # Never collapse to a single block: target ~8 grid steps (per-step overhead is
    # only ~0.35 us) so BlockSpec double-buffering hides the DMAs and, on v7x, both
    # TensorCores get balanced work under dimension_semantics=("parallel",).
    target_blocks = 8
    b = min(cap, max(8, _round_up(pl.cdiv(num_sample, target_blocks), 8)))

    # Best effort: prefer an even number of blocks (v7x megacore balance).
    while b > 8 and pl.cdiv(num_sample, b) % 2 == 1:
        b -= 8
    return b


def loss_fn_pallas(output, label, length_sen, num_sample, batch_size):
    """Pallas implementation of LossFn.forward."""
    N, L, C = output.shape
    assert N == num_sample
    LC = L * C

    # Lane-dense layout: last dim becomes L*C.
    out2d = output.reshape(N, LC)
    lab2d = label.reshape(N, LC)

    # Pad the flattened axis to a lane multiple only when needed.  The tail columns
    # are always masked (col >= L*C >= length*C), so `num_classes` stays C.
    # NOTE: best done upstream by the caller so the pad copy adds no HBM traffic.
    LCp = max(128, _round_up(LC, 128))
    if LCp != LC:
        out2d = jnp.pad(out2d, ((0, 0), (0, LCp - LC)))
        lab2d = jnp.pad(lab2d, ((0, 0), (0, LCp - LC)))

    B_blk = _choose_block(N, LCp)
    num_blocks = pl.cdiv(N, B_blk)
    Npad = num_blocks * B_blk

    # INVARIANT: lengths are zero-padded to Npad.  Rows >= N (read as garbage by a
    # partial last block) then get an all-false mask and contribute exactly 0.
    lengths = jnp.zeros((Npad, 1), jnp.int32).at[:N, 0].set(
        length_sen.astype(jnp.int32))

    kernel = functools.partial(_loss_kernel, num_classes=C)

    itemsize = jnp.dtype(output.dtype).itemsize
    cost = pl.CostEstimate(
        flops=5 * Npad * LCp,
        transcendentals=Npad * LCp,
        bytes_accessed=2 * Npad * LCp * itemsize + Npad * 4 + Npad * 4,
    )

    grid_spec = pltpu.PrefetchScalarGridSpec(
        num_scalar_prefetch=0,
        grid=(num_blocks,),
        in_specs=[
            pl.BlockSpec((B_blk, 1), lambda i: (i, 0)),      # lengths (int32)
            pl.BlockSpec((B_blk, LCp), lambda i: (i, 0)),    # output (native dtype)
            pl.BlockSpec((B_blk, LCp), lambda i: (i, 0)),    # label  (native dtype)
        ],
        out_specs=pl.BlockSpec((B_blk, 1), lambda i: (i, 0)),
    )

    per_sample = pl.pallas_call(
        kernel,
        grid_spec=grid_spec,
        out_shape=jax.ShapeDtypeStruct((Npad, 1), jnp.float32),
        compiler_params=pltpu.CompilerParams(
            dimension_semantics=("parallel",),
            vmem_limit_bytes=32 * 1024 * 1024,
        ),
        cost_estimate=cost,
    )(lengths, out2d, lab2d)

    # Padded rows are exactly zero, so summing everything is safe. /batch_size is glue.
    return jnp.sum(per_sample) / jnp.float32(batch_size)


def loss_fn_ref(output, label, length_sen, num_sample, batch_size):
    """Pure-JAX reference mirroring the PyTorch loop (f32 math, like the kernel)."""
    delta = 1e-07
    out = jnp.asarray(output, jnp.float32)
    lab = jnp.asarray(label, jnp.float32)
    result = jnp.float32(0.0)
    for i in range(num_sample):
        length = int(length_sen[i])
        ot = out[i, :length, :]
        lt = lab[i, :length, :]
        result = result - jnp.sum(lt * jnp.log(ot + delta)) / length
    return result / batch_size


if __name__ == "__main__":
    key = jax.random.PRNGKey(0)
    num_sample = 32
    batch_size = 32
    L = 16          # max sentence length
    C = 32          # number of classes

    k1, k2, k3 = jax.random.split(key, 3)
    # "output" behaves like per-timestep class probabilities -> softmax of logits.
    logits = jax.random.normal(k1, (num_sample, L, C), dtype=jnp.float32)
    output = jax.nn.softmax(logits, axis=-1)
    # "label" as one-hot targets.
    tgt = jax.random.randint(k2, (num_sample, L), 0, C)
    label = jax.nn.one_hot(tgt, C, dtype=jnp.float32)
    # Variable sentence lengths in [1, L].
    length_sen = jax.random.randint(k3, (num_sample,), 1, L + 1).astype(jnp.int32)

    # float32 path (matches the PyTorch module exactly).
    loss = loss_fn_pallas(output, label, length_sen, num_sample, batch_size)
    loss = jax.block_until_ready(loss)
    ref = loss_fn_ref(output, label, length_sen, num_sample, batch_size)
    assert jnp.allclose(loss, ref, rtol=1e-5, atol=1e-5), (loss, ref)

    # bf16 caller contract (recommended: halves HBM bytes on this mem-bound kernel);
    # the kernel upcasts to f32 internally, same as the reference.
    out_bf = output.astype(jnp.bfloat16)
    lab_bf = label.astype(jnp.bfloat16)
    loss_bf = loss_fn_pallas(out_bf, lab_bf, length_sen, num_sample, batch_size)
    loss_bf = jax.block_until_ready(loss_bf)
    ref_bf = loss_fn_ref(out_bf, lab_bf, length_sen, num_sample, batch_size)
    assert jnp.allclose(loss_bf, ref_bf, rtol=1e-4, atol=1e-4), (loss_bf, ref_bf)

    print("KERNEL_OK")
</pallas_src>

<mosaic_0001>
module attributes {stable_mosaic.version = 11 : i64} {
  func.func @_loss_kernel(%arg0: i32, %arg1: memref<8x1xi32, #tpu.memory_space<vmem>>, %arg2: memref<8x512xf32, #tpu.memory_space<vmem>>, %arg3: memref<8x512xf32, #tpu.memory_space<vmem>>, %arg4: memref<8x1xf32, #tpu.memory_space<vmem>>) attributes {dimension_semantics = [#tpu.dimension_semantics<parallel>], iteration_bounds = array<i64: 4>, scalar_prefetch = 0 : i64, scratch_operands = 0 : i64, tpu.core_type = #tpu.core_type<tc>, window_params = [{transform_indices = @transform_0, window_bounds = array<i64: 8, 1>}, {transform_indices = @transform_1, window_bounds = array<i64: 8, 512>}, {transform_indices = @transform_2, window_bounds = array<i64: 8, 512>}, {transform_indices = @transform_3, window_bounds = array<i64: 8, 1>}]} {
    %c0 = arith.constant 0 : index
    %c0_0 = arith.constant 0 : index
    %0 = vector.load %arg2[%c0, %c0_0] : memref<8x512xf32, #tpu.memory_space<vmem>>, vector<8x512xf32>
    %c0_1 = arith.constant 0 : index
    %c0_2 = arith.constant 0 : index
    %1 = vector.load %arg3[%c0_1, %c0_2] : memref<8x512xf32, #tpu.memory_space<vmem>>, vector<8x512xf32>
    %c0_3 = arith.constant 0 : index
    %c0_4 = arith.constant 0 : index
    %2 = vector.load %arg1[%c0_3, %c0_4] : memref<8x1xi32, #tpu.memory_space<vmem>>, vector<8x1xi32>
    %3 = tpu.iota {dimensions = array<i32: 1>} : vector<8x512xi32>
    %c32_i32 = arith.constant 32 : i32
    %4 = vector.broadcast %c32_i32 : i32 to vector<8x1xi32>
    %5 = arith.muli %2, %4 : vector<8x1xi32>
    %6 = vector.broadcast %5 : vector<8x1xi32> to vector<8x512xi32>
    %7 = arith.cmpi slt, %3, %6 : vector<8x512xi32>
    %cst = arith.constant 0.000000e+00 : f32
    %8 = vector.broadcast %cst : f32 to vector<8x512xf32>
    %9 = arith.select %7, %1, %8 : vector<8x512xi1>, vector<8x512xf32>
    %cst_5 = arith.constant 1.000000e-07 : f32
    %10 = vector.broadcast %cst_5 : f32 to vector<8x512xf32>
    %11 = arith.addf %0, %10 : vector<8x512xf32>
    %cst_6 = arith.constant 1.000000e+00 : f32
    %12 = vector.broadcast %cst_6 : f32 to vector<8x512xf32>
    %13 = arith.select %7, %11, %12 : vector<8x512xi1>, vector<8x512xf32>
    %14 = math.log %13 : vector<8x512xf32>
    %15 = arith.mulf %9, %14 : vector<8x512xf32>
    %cst_7 = arith.constant dense<0.000000e+00> : vector<8xf32>
    %16 = vector.multi_reduction <add>, %15, %cst_7 [1] : vector<8x512xf32> to vector<8xf32>
    %17 = vector.shape_cast %16 : vector<8xf32> to vector<8x1xf32>
    %18 = arith.sitofp %2 : vector<8x1xi32> to vector<8x1xf32>
    %cst_8 = arith.constant 0.000000e+00 : f32
    %19 = vector.broadcast %cst_8 : f32 to vector<8x1xf32>
    %20 = arith.cmpf ogt, %18, %19 : vector<8x1xf32>
    %cst_9 = arith.constant 1.000000e+00 : f32
    %21 = vector.broadcast %cst_9 : f32 to vector<8x1xf32>
    %22 = arith.maximumf %18, %21 : vector<8x1xf32>
    %cst_10 = arith.constant 1.000000e+00 : f32
    %23 = vector.broadcast %cst_10 : f32 to vector<8x1xf32>
    %24 = arith.divf %23, %22 : vector<8x1xf32>
    %cst_11 = arith.constant 0.000000e+00 : f32
    %25 = vector.broadcast %cst_11 : f32 to vector<8x1xf32>
    %26 = arith.select %20, %24, %25 : vector<8x1xi1>, vector<8x1xf32>
    %27 = arith.mulf %17, %26 : vector<8x1xf32>
    %cst_12 = arith.constant 0.000000e+00 : f32
    %28 = vector.broadcast %cst_12 : f32 to vector<8x1xf32>
    %29 = arith.subf %28, %27 : vector<8x1xf32>
    %c0_13 = arith.constant 0 : index
    %c0_14 = arith.constant 0 : index
    %30 = vector.load %arg4[%c0_13, %c0_14] : memref<8x1xf32, #tpu.memory_space<vmem>>, vector<8x1xf32>
    tpu.vector_store %arg4[%c0_13, %c0_14], %29 {strides = array<i32>} : memref<8x1xf32, #tpu.memory_space<vmem>>, vector<8x1xf32>,
    return
  }
  func.func @transform_0(%arg0: i32) -> (i32, i32) {
    %c0_i32 = arith.constant 0 : i32
    %c0_i32_0 = arith.constant 0 : i32
    return %arg0, %c0_i32 : i32, i32
  }
  func.func @transform_1(%arg0: i32) -> (i32, i32) {
    %c0_i32 = arith.constant 0 : i32
    %c0_i32_0 = arith.constant 0 : i32
    return %arg0, %c0_i32 : i32, i32
  }
  func.func @transform_2(%arg0: i32) -> (i32, i32) {
    %c0_i32 = arith.constant 0 : i32
    %c0_i32_0 = arith.constant 0 : i32
    return %arg0, %c0_i32 : i32, i32
  }
  func.func @transform_3(%arg0: i32) -> (i32, i32) {
    %c0_i32 = arith.constant 0 : i32
    %c0_i32_0 = arith.constant 0 : i32
    return %arg0, %c0_i32 : i32, i32
  }
}

</mosaic_0001>

<llo_original>
// kernel: tpu_custom_call.1
$region0: #{tpu_custom_call.1}
  #allocation0 [shape = 'u32[]', space=smem, size = 0x4, offset = 0x4, fixed_abs, tag = 'smem constant byte address 0x4 - core index']
  #allocation1 [shape = 'u32[144,128]{1,0:T(1,128)}', space=vmem, size = 0x12000, scoped, tag = 'internal scratch']
  %s0 = inlined_call_operand.vmem [shape: s32[32,1], index: 0, kind: input, shape index: {}]
  %s1 = inlined_call_operand.hbm [shape: f32[32,512], index: 1, kind: input, shape index: {}]
  %s2 = inlined_call_operand.hbm [shape: f32[32,512], index: 2, kind: input, shape index: {}]
  %s3 = inlined_call_operand.vmem [shape: f32[32,1], index: 3, kind: output, shape index: {}]
  %s4 = sld [smem:[#allocation0]]
  $region53: #{tpu_custom_call.1} parent=0
    _
  %s6 = ssub.s32 1, %s4
  %s7 = scalar_select 0, %s6, %s4
  $region1: #{tpu_custom_call.1} parent=0
    #allocation2 [shape = 'u8[32768]{0}', space=vmem, size = 0x8000, scoped, tag = 'input window, operand 1']
    #allocation3 [shape = 's32[2]{0}', space=sflag, size = 0x8, scoped, tag = 'scoped memory for tpu_custom_call.1']
    #allocation4 [shape = 'u8[32768]{0}', space=vmem, size = 0x8000, scoped, tag = 'input window, operand 2']
    #allocation5 [shape = 's32[2]{0}', space=sflag, size = 0x8, scoped, tag = 'scoped memory for tpu_custom_call.1']
    %8 = vsyncpa [#allocation3], 0
    %s9 = scalar_lea.sflag [#allocation3], 1
    %10 = vsyncpa %s9, 0
    %11 = vsyncpa [#allocation5], 0
    %s12 = scalar_lea.sflag [#allocation5], 1
    %13 = vsyncpa %s12, 0
    loop: start=0, step=1, limit=6
    $region2: #{tpu_custom_call.1} parent=1 // loop_pre_header
      _
    $region3: #{tpu_custom_call.1} parent=1 // loop_header
      %s15 = sphi 0, %s19
      %p16 = scmp.ge.s32.totalorder %s15, 6
      %s25 = sphi 0, %s27
      %s28 = sphi 0, %s25
      %s29 = sphi 0, %s28
      %s45 = sphi 0, %s29
      %s51 = sphi 0, %s53
      %s54 = sphi 0, %s51
      %s55 = sphi 0, %s54
      %s71 = sphi 0, %s55
      %s77 = sphi 0, %s79
      %s80 = sphi 0, %s77
      %s81 = sphi 0, %s80
      %s97 = sphi 0, %s81
      %s103 = sphi 0, %s105
      %s106 = sphi 0, %s103
      %s107 = sphi 0, %s106
      %s123 = sphi 0, %s107
    $region4: #{tpu_custom_call.1} parent=1 // loop_header_branch
      %18 = sbr.rel (%p16) target = $region8
    $region5: #{tpu_custom_call.1} parent=1 // loop_body
      %s20 = ssub.s32 %s15, 1
      %s21 = ssub.s32 %s15, 2
      %s22 = sadd.s32 %s15, 1
      %s23 = ssub.s32 %s15, %s22
      %p24 = scmp.eq.s32.totalorder %s23, 0
      %s26 = sadd.s32 %s25, 1
      %s27 = scalar_select %p24, %s25, %s26
      %p30 = pneg %p24
      %p31 = scmp.eq.s32.totalorder %s15, 3
      %p32 = por %p30, %p31
      %p33 = scmp.ne.s32.totalorder %s25, %s28
      %p34 = scmp.eq.s32.totalorder %s15, 0
      %p35 = por %p33, %p34
      %p36 = scmp.ne.s32.totalorder %s25, %s28
      %p37 = scmp.eq.s32.totalorder %s20, 3
      %p38 = por %p36, %p37
      %p39 = scmp.ne.s32.totalorder %s28, %s29
      %p40 = scmp.eq.s32.totalorder %s20, 0
      %p41 = por %p39, %p40
      %p42 = scmp.ne.s32.totalorder %s28, %s29
      %p43 = scmp.eq.s32.totalorder %s21, 3
      %p44 = por %p42, %p43
      %p46 = scmp.ne.s32.totalorder %s29, %s45
      %p47 = scmp.eq.s32.totalorder %s21, 0
      %p48 = por %p46, %p47
      %s49 = ssub.s32 %s15, %s22
      %p50 = scmp.eq.s32.totalorder %s49, 0
      %s52 = sadd.s32 %s51, 1
      %s53 = scalar_select %p50, %s51, %s52
      %p56 = pneg %p50
      %p57 = scmp.eq.s32.totalorder %s15, 3
      %p58 = por %p56, %p57
      %p59 = scmp.ne.s32.totalorder %s51, %s54
      %p60 = scmp.eq.s32.totalorder %s15, 0
      %p61 = por %p59, %p60
      %p62 = scmp.ne.s32.totalorder %s51, %s54
      %p63 = scmp.eq.s32.totalorder %s20, 3
      %p64 = por %p62, %p63
      %p65 = scmp.ne.s32.totalorder %s54, %s55
      %p66 = scmp.eq.s32.totalorder %s20, 0
      %p67 = por %p65, %p66
      %p68 = scmp.ne.s32.totalorder %s54, %s55
      %p69 = scmp.eq.s32.totalorder %s21, 3
      %p70 = por %p68, %p69
      %p72 = scmp.ne.s32.totalorder %s55, %s71
      %p73 = scmp.eq.s32.totalorder %s21, 0
      %p74 = por %p72, %p73
      %s75 = ssub.s32 %s15, %s22
      %p76 = scmp.eq.s32.totalorder %s75, 0
      %s78 = sadd.s32 %s77, 1
      %s79 = scalar_select %p76, %s77, %s78
      %p82 = pneg %p76
      %p83 = scmp.eq.s32.totalorder %s15, 3
      %p84 = por %p82, %p83
      %p85 = scmp.ne.s32.totalorder %s77, %s80
      %p86 = scmp.eq.s32.totalorder %s15, 0
      %p87 = por %p85, %p86
      %p88 = scmp.ne.s32.totalorder %s77, %s80
      %p89 = scmp.eq.s32.totalorder %s20, 3
      %p90 = por %p88, %p89
      %p91 = scmp.ne.s32.totalorder %s80, %s81
      %p92 = scmp.eq.s32.totalorder %s20, 0
      %p93 = por %p91, %p92
      %p94 = scmp.ne.s32.totalorder %s80, %s81
      %p95 = scmp.eq.s32.totalorder %s21, 3
      %p96 = por %p94, %p95
      %p98 = scmp.ne.s32.totalorder %s81, %s97
      %p99 = scmp.eq.s32.totalorder %s21, 0
      %p100 = por %p98, %p99
      %s101 = ssub.s32 %s15, %s22
      %p102 = scmp.eq.s32.totalorder %s101, 0
      %s104 = sadd.s32 %s103, 1
      %s105 = scalar_select %p102, %s103, %s104
      %p108 = pneg %p102
      %p109 = scmp.eq.s32.totalorder %s15, 3
      %p110 = por %p108, %p109
      %p111 = scmp.ne.s32.totalorder %s103, %s106
      %p112 = scmp.eq.s32.totalorder %s15, 0
      %p113 = por %p111, %p112
      %p114 = scmp.ne.s32.totalorder %s103, %s106
      %p115 = scmp.eq.s32.totalorder %s20, 3
      %p116 = por %p114, %p115
      %p117 = scmp.ne.s32.totalorder %s106, %s107
      %p118 = scmp.eq.s32.totalorder %s20, 0
      %p119 = por %p117, %p118
      %p120 = scmp.ne.s32.totalorder %s106, %s107
      %p121 = scmp.eq.s32.totalorder %s21, 3
      %p122 = por %p120, %p121
      %p124 = scmp.ne.s32.totalorder %s107, %s123
      %p125 = scmp.eq.s32.totalorder %s21, 0
      %p126 = por %p124, %p125
      %p127 = scmp.le.s32.totalorder 1, %s15
      %p128 = scmp.lt.s32.totalorder %s15, 5
      %p129 = pnand %p127, %p128
      %p130 = pneg %p129
      // Predicated region
      $region9: #{tpu_custom_call.1} parent=5 // pred_check
        _
      $region10: #{tpu_custom_call.1} parent=5 // pred_check_branch
        %132 = sbr.rel (%p129) target = $region12
      $region11: #{tpu_custom_call.1} parent=5 // pred_region
        %s133 = ssub.s32 %s15, 1
      $region12: #{tpu_custom_call.1} parent=5 // pred_fallthru
        _
      %p134 = scmp.lt.s32.totalorder %s15, 4
      // Predicated region
      $region13: #{tpu_custom_call.1} parent=5 // pred_check
        %p135 = pneg %p134
      $region14: #{tpu_custom_call.1} parent=5 // pred_check_branch
        %137 = sbr.rel (%p135) target = $region16
      $region15: #{tpu_custom_call.1} parent=5 // pred_region
        // Predicated region
        $region17: #{tpu_custom_call.1} parent=15 // pred_check
          %p138 = pneg %p35
        $region18: #{tpu_custom_call.1} parent=15 // pred_check_branch
          %140 = sbr.rel (%p138) target = $region20
        $region19: #{tpu_custom_call.1} parent=15 // pred_region
          %p141 = scmp.lt.s32.totalorder %s15, 3
          %s142 = scalar_select %p141, %s15, 3
          %s143 = smul.addr %s142, 8
          %s144 = scalar_lea.vmem %s0, %s143
        $region20: #{tpu_custom_call.1} parent=15 // pred_fallthru
          _
        // Predicated region
        $region21: #{tpu_custom_call.1} parent=15 // pred_check
          %p145 = pneg %p61
        $region22: #{tpu_custom_call.1} parent=15 // pred_check_branch
          %147 = sbr.rel (%p145) target = $region24
        $region23: #{tpu_custom_call.1} parent=15 // pred_region
          %s148 = sand.u32 %s51, 1
          %s149 = scalar_lea.sflag [#allocation3], %s148
          %s150 = sand.u32 %s51, 1
          %s151 = smul.addr %s150, 32
          %s152 = scalar_lea.vmem [#allocation2], %s151
          %s154 = ssub.s32 512, 512
          %155 = vsyncadd %s149, %s154
          %s156 = smul.addr %s15, 4
          %s157 = smul.addr %s156, 128
          %s158 = scalar_lea.hbm %s1, %s157
          %s160 = sshll.u32 %s152, 4
          %s161 = int_to_ptr.vmem [resolvable:$true] %s160
          %163 = dma.hbm_to_vmem [thread:$0]  %s158, 512, %s161, %s149
        $region24: #{tpu_custom_call.1} parent=15 // pred_fallthru
          _
        // Predicated region
        $region25: #{tpu_custom_call.1} parent=15 // pred_check
          %p164 = pneg %p87
        $region26: #{tpu_custom_call.1} parent=15 // pred_check_branch
          %166 = sbr.rel (%p164) target = $region28
        $region27: #{tpu_custom_call.1} parent=15 // pred_region
          %s167 = sand.u32 %s77, 1
          %s168 = scalar_lea.sflag [#allocation5], %s167
          %s169 = sand.u32 %s77, 1
          %s170 = smul.addr %s169, 32
          %s171 = scalar_lea.vmem [#allocation4], %s170
          %s173 = ssub.s32 512, 512
          %174 = vsyncadd %s168, %s173
          %s175 = smul.addr %s15, 4
          %s176 = smul.addr %s175, 128
          %s177 = scalar_lea.hbm %s2, %s176
          %s179 = sshll.u32 %s171, 4
          %s180 = int_to_ptr.vmem [resolvable:$true] %s179
          %182 = dma.hbm_to_vmem [thread:$0]  %s177, 512, %s180, %s168
        $region28: #{tpu_custom_call.1} parent=15 // pred_fallthru
          _
      $region16: #{tpu_custom_call.1} parent=5 // pred_fallthru
        _
      %p183 = scmp.le.s32.totalorder 1, %s15
      %p184 = scmp.lt.s32.totalorder %s15, 5
      %p185 = pnand %p183, %p184
      %p186 = pneg %p185
      // Predicated region
      $region29: #{tpu_custom_call.1} parent=5 // pred_check
        _
      $region30: #{tpu_custom_call.1} parent=5 // pred_check_branch
        %188 = sbr.rel (%p185) target = $region32
      $region31: #{tpu_custom_call.1} parent=5 // pred_region
        %s189 = ssub.s32 %s15, 1
        %s190 = sand.u32 %s54, 1
        %s191 = scalar_lea.sflag [#allocation3], %s190
        %s192 = sand.u32 %s54, 1
        %s193 = smul.addr %s192, 32
        %s194 = scalar_lea.vmem [#allocation2], %s193
        // Predicated region
        $region33: #{tpu_custom_call.1} parent=31 // pred_check
          %p195 = pneg %p67
        $region34: #{tpu_custom_call.1} parent=31 // pred_check_branch
          %197 = sbr.rel (%p195) target = $region36
        $region35: #{tpu_custom_call.1} parent=31 // pred_region
          %198 = dma.done %s191, 512
        $region36: #{tpu_custom_call.1} parent=31 // pred_fallthru
          _
        %s199 = sand.u32 %s80, 1
        %s200 = scalar_lea.sflag [#allocation5], %s199
        %s201 = sand.u32 %s80, 1
        %s202 = smul.addr %s201, 32
        %s203 = scalar_lea.vmem [#allocation4], %s202
        // Predicated region
        $region37: #{tpu_custom_call.1} parent=31 // pred_check
          %p204 = pneg %p93
        $region38: #{tpu_custom_call.1} parent=31 // pred_check_branch
          %206 = sbr.rel (%p204) target = $region40
        $region39: #{tpu_custom_call.1} parent=31 // pred_region
          %207 = dma.done %s200, 512
        $region40: #{tpu_custom_call.1} parent=31 // pred_fallthru
          _
        %p208 = scmp.lt.s32.totalorder %s20, 3
        %s209 = scalar_select %p208, %s20, 3
        %s210 = smul.addr %s209, 8
        %s211 = scalar_lea.vmem %s0, %s210
        %p212 = pneg %p41
        %p213 = pneg %p38
        %s214 = sand.u32 %s54, 1
        %s215 = scalar_lea.sflag [#allocation3], %s214
        %s216 = sand.u32 %s54, 1
        %s217 = smul.addr %s216, 32
        %s218 = scalar_lea.vmem [#allocation2], %s217
        %p219 = pneg %p67
        %p220 = pneg %p64
        %s221 = sand.u32 %s80, 1
        %s222 = scalar_lea.sflag [#allocation5], %s221
        %s223 = sand.u32 %s80, 1
        %s224 = smul.addr %s223, 32
        %s225 = scalar_lea.vmem [#allocation4], %s224
        %p226 = pneg %p93
        %p227 = pneg %p90
        %p228 = pneg %p119
        %p229 = pneg %p116
        %p230 = scmp.lt.s32.totalorder %s20, 3
        %s231 = scalar_select %p230, %s20, 3
        %s232 = smul.addr %s231, 8
        %s233 = scalar_lea.vmem %s3, %s232
        %p234 = scmp.lt.s32.totalorder %s20, 3
        %s235 = scalar_select %p234, %s20, 3
        %s236 = smul.addr %s235, 8
        %s237 = scalar_lea.vmem %s0, %s236
        %p238 = scmp.lt.s32.totalorder %s20, 3
        %s239 = scalar_select %p238, %s20, 3
        %s240 = smul.addr %s239, 8
        %s241 = scalar_lea.vmem %s3, %s240
        %v242 = vld [vmem:[%s194] sm:$0xff]
        %v243 = vld [vmem:[%s194 + $0x8] sm:$0xff]
        %v244 = vld [vmem:[%s194 + $0x10] sm:$0xff]
        %v245 = vld [vmem:[%s194 + $0x18] sm:$0xff]
        %v246 = vld [vmem:[%s203] sm:$0xff]
        %v247 = vld [vmem:[%s203 + $0x8] sm:$0xff]
        %v248 = vld [vmem:[%s203 + $0x10] sm:$0xff]
        %v249 = vld [vmem:[%s203 + $0x18] sm:$0xff]
        %v250 = vld [vmem:[%s237] sm:$0xff]
        %v251 = vlaneseq
        %v252 = vand.u32 %v251, 127
        %v253 = vadd.s32 %v252, 128
        %v254 = vadd.s32 %v252, 256
        %v255 = vadd.s32 %v252, 384
        %v256 = vmul.u32 %v250, 32
        %257 = vset.pattern.permute.xlu0 0
        %258 = vperm.xlu0 %257, %v256
        %v259 = vpop.permute.xlu0 %258
        %vm260 = vcmp.lt.s32.totalorder %v252, %v259
        %vm261 = vcmp.lt.s32.totalorder %v253, %v259
        %vm262 = vcmp.lt.s32.totalorder %v254, %v259
        %vm263 = vcmp.lt.s32.totalorder %v255, %v259
        %v264 = vsel %vm260, %v246, 0.0
        %v265 = vsel %vm261, %v247, 0.0
        %v266 = vsel %vm262, %v248, 0.0
        %v267 = vsel %vm263, %v249, 0.0
        %v268 = vadd.f32 %v242, 1e-07
        %v269 = vadd.f32 %v243, 1e-07
        %v270 = vadd.f32 %v244, 1e-07
        %v271 = vadd.f32 %v245, 1e-07
        %v272 = vsel %vm260, %v268, 1.0
        %v273 = vsel %vm261, %v269, 1.0
        %v274 = vsel %vm262, %v270, 1.0
        %v275 = vsel %vm263, %v271, 1.0
        %v276 = vlog2.pop %v272
        %v277 = vmul.f32 %v276, 0.6931472
        %v278 = vlog2.pop %v273
        %v279 = vmul.f32 %v278, 0.6931472
        %v280 = vlog2.pop %v274
        %v281 = vmul.f32 %v280, 0.6931472
        %v282 = vlog2.pop %v275
        %v283 = vmul.f32 %v282, 0.6931472
        %v284 = vmul.f32 %v264, %v277
        %v285 = vmul.f32 %v265, %v279
        %v286 = vmul.f32 %v266, %v281
        %v287 = vmul.f32 %v267, %v283
        %v288 = vadd.f32 %v284, %v285
        %v289 = vadd.f32 %v288, %v286
        %v290 = vadd.f32 %v289, %v287
        %291 = vadd.xlane.f32.xlu0 %v290
        %v292 = vpop.xlane.xlu0 %291
        %v293 = vcvt.s32.f32 %v250
        %vm294 = vcmp.gt.f32.partialorder %v293, 0.0
        %v295 = vmax.f32 %v293, 1.0
        %v296 = vrcp.pop %v295
        %v297 = vmul.f32 1.0, %v296
        %v298 = vsel %vm294, %v297, 0.0
        %v299 = vmul.f32 %v292, %v298
        %v300 = vsub.f32 0.0, %v299
        %vm301 = vcmask 7168
        %302 = vst.msk [vmem:[%s241] sm:$0xff] %vm301, %v300
        %p303 = scmp.lt.s32.totalorder %s20, 3
        %s304 = scalar_select %p303, %s20, 3
        %s305 = smul.addr %s304, 8
        %s306 = scalar_lea.vmem %s3, %s305
        // Predicated region
        $region41: #{tpu_custom_call.1} parent=31 // pred_check
          %p307 = pneg %p116
        $region42: #{tpu_custom_call.1} parent=31 // pred_check_branch
          %309 = sbr.rel (%p307) target = $region44
        $region43: #{tpu_custom_call.1} parent=31 // pred_region
          _
        $region44: #{tpu_custom_call.1} parent=31 // pred_fallthru
          _
      $region32: #{tpu_custom_call.1} parent=5 // pred_fallthru
        _
      %p310 = scmp.le.s32.totalorder 2, %s15
      // Predicated region
      $region45: #{tpu_custom_call.1} parent=5 // pred_check
        %p311 = pneg %p310
      $region46: #{tpu_custom_call.1} parent=5 // pred_check_branch
        %313 = sbr.rel (%p311) target = $region48
      $region47: #{tpu_custom_call.1} parent=5 // pred_region
        %s314 = ssub.s32 %s15, 2
        // Predicated region
        $region49: #{tpu_custom_call.1} parent=47 // pred_check
          %p315 = pneg %p122
        $region50: #{tpu_custom_call.1} parent=47 // pred_check_branch
          %317 = sbr.rel (%p315) target = $region52
        $region51: #{tpu_custom_call.1} parent=47 // pred_region
          %p318 = scmp.lt.s32.totalorder %s21, 3
          %s319 = scalar_select %p318, %s21, 3
          %s320 = smul.addr %s319, 8
          %s321 = scalar_lea.vmem %s3, %s320
        $region52: #{tpu_custom_call.1} parent=47 // pred_fallthru
          _
      $region48: #{tpu_custom_call.1} parent=5 // pred_fallthru
        _
    $region6: #{tpu_custom_call.1} parent=1 // loop_footer
      %s19 = sadd.s32 1, %s15
    $region7: #{tpu_custom_call.1} parent=1 // loop_footer_branch
      %14 = sbr.rel target = $region3
    $region8: #{tpu_custom_call.1} parent=1 // loop_exit
      _
    %322 = vsyncpa [#allocation3], 1
    %s323 = scalar_lea.sflag [#allocation3], 1
    %324 = vsyncpa %s323, 1
    %325 = vsyncpa [#allocation5], 1
    %s326 = scalar_lea.sflag [#allocation5], 1
    %327 = vsyncpa %s326, 1

</llo_original>
